<compile_context>
chip_gen: v5e
topology: v5e:2x2
jax: 0.10.0
libtpu: 0.0.40
codegen_flags: <defaults>
</compile_context>

<pallas_src>
import math
import functools

import jax
import jax.numpy as jnp
from jax.experimental import pallas as pl
from jax.experimental.pallas import tpu as pltpu  # noqa: F401 (TPU backend)


def attention_fusion_kernel(
    macro_ref, micro_ref,
    wq_ref, bq_ref, wk_ref, bk_ref, wv_ref, bv_ref, wo_ref, bo_ref,
    out_ref,
    *, n_heads: int, head_dim: int,
):
    """Whole forward pass, all operands VMEM-resident (grid-less call).

    Shapes inside the kernel use the lane-padded hidden dim D_pad:
      macro/micro : (N, D_pad)      weights : (D_pad, D_pad)   biases : (1, D_pad)
    Real data lives in the first n_heads*head_dim columns; padded columns of
    the weights/biases are zero, so Q/K/V/out padding stays zero.
    """
    f32 = jnp.float32
    macro = macro_ref[...]
    micro = micro_ref[...]

    # Projections: MXU matmuls with f32 accumulation (no operand upcasts).
    q = jnp.dot(macro, wq_ref[...], preferred_element_type=f32) + bq_ref[...]
    k = jnp.dot(micro, wk_ref[...], preferred_element_type=f32) + bk_ref[...]
    v = jnp.dot(micro, wv_ref[...], preferred_element_type=f32) + bv_ref[...]

    scale = 1.0 / math.sqrt(head_dim)

    # Fused concat + out_proj: out = sum_h (A_h @ Wo[h*hd:(h+1)*hd, :]) + bo.
    acc = jnp.zeros(out_ref.shape, f32)

    # Static per-head loop (n_heads is a compile-time constant).
    for h in range(n_heads):
        lo = h * head_dim
        hi = lo + head_dim
        qh = q[:, lo:hi] * scale          # fold scale into (N, hd), not (N, N)
        kh = k[:, lo:hi]
        vh = v[:, lo:hi]

        # scores (N, N): contract last dims directly — no XLU transpose of kh.
        s = jax.lax.dot_general(
            qh, kh, (((1,), (1,)), ((), ())), preferred_element_type=f32)

        # numerically-stable softmax along last dim; reciprocal on the EUP.
        m = jnp.max(s, axis=-1, keepdims=True)
        p = jnp.exp(s - m)
        p = p * pl.reciprocal(jnp.sum(p, axis=-1, keepdims=True), approx=True)

        ah = jnp.dot(p, vh, preferred_element_type=f32)          # (N, hd)
        # per-head contribution to the output projection (no lane concat);
        # Wo row-slice starts are multiples of head_dim=8 -> sublane-aligned.
        acc = acc + jnp.dot(ah, wo_ref[lo:hi, :], preferred_element_type=f32)

    out_ref[...] = (acc + bo_ref[...]).astype(out_ref.dtype)


def attention_fusion(macro, micro, params, *, n_heads: int):
    """Wrapper: lane-pads to D_pad (multiple of 128), runs a grid-less
    pallas_call with everything VMEM-resident, and slices the result back."""
    N, D = macro.shape
    assert D % n_heads == 0
    head_dim = D // n_heads
    assert N % 8 == 0, "token count must be a multiple of 8 (sublane tiling)"

    # Pad the hidden dim to a lane-dense multiple of 128. Zero padding of the
    # weights/biases keeps the padded columns of Q/K/V/out identically zero,
    # and the per-head slices only touch the real columns, so no masking is
    # required for the softmax.
    D_pad = max(128, pl.cdiv(D, 128) * 128)
    pad = D_pad - D

    def pad_w(w):   # (D, D) -> (D_pad, D_pad)
        return jnp.pad(w, ((0, pad), (0, pad)))

    def pad_b(b):   # (1, D) -> (1, D_pad)
        return jnp.pad(b, ((0, 0), (0, pad)))

    macro_p = jnp.pad(macro, ((0, 0), (0, pad)))
    micro_p = jnp.pad(micro, ((0, 0), (0, pad)))

    kernel = functools.partial(
        attention_fusion_kernel, n_heads=n_heads, head_dim=head_dim)

    # No grid / no BlockSpecs: single invocation, full arrays brought into
    # VMEM once (weights are not double-buffered). Total footprint is tiny
    # (< 1 MiB), far under every chip's scoped VMEM limit.
    out_p = pl.pallas_call(
        kernel,
        out_shape=jax.ShapeDtypeStruct((N, D_pad), macro.dtype),
    )(
        macro_p, micro_p,
        pad_w(params["wq"]), pad_b(params["bq"]),
        pad_w(params["wk"]), pad_b(params["bk"]),
        pad_w(params["wv"]), pad_b(params["bv"]),
        pad_w(params["wo"]), pad_b(params["bo"]),
    )
    return out_p[:, :D]


def reference_attention_fusion(macro, micro, params, *, n_heads: int):
    """Pure-JAX reference mirroring the PyTorch forward."""
    N, D = macro.shape
    head_dim = D // n_heads
    q = macro @ params["wq"] + params["bq"]
    k = micro @ params["wk"] + params["bk"]
    v = micro @ params["wv"] + params["bv"]
    q = q.reshape(N, n_heads, head_dim).transpose(1, 0, 2)
    k = k.reshape(N, n_heads, head_dim).transpose(1, 0, 2)
    v = v.reshape(N, n_heads, head_dim).transpose(1, 0, 2)
    s = jnp.einsum("hqd,hkd->hqk", q, k) / math.sqrt(head_dim)
    w = jax.nn.softmax(s, axis=-1)
    a = jnp.einsum("hqk,hkd->hqd", w, v)
    a = a.transpose(1, 0, 2).reshape(N, D)
    return a @ params["wo"] + params["bo"]


def init_params(key, hidden_dim):
    """Deterministic init. nn.Linear weight is (out, in); we store (in, out)."""
    keys = jax.random.split(key, 8)
    bound = 1.0 / math.sqrt(hidden_dim)  # torch default uniform bound

    def lin(kw, kb):
        w = jax.random.uniform(kw, (hidden_dim, hidden_dim), jnp.float32,
                               minval=-bound, maxval=bound)  # (out, in)
        b = jax.random.uniform(kb, (hidden_dim,), jnp.float32,
                               minval=-bound, maxval=bound)
        # store transposed weight (in, out) and bias as (1, D)
        return w.T, b.reshape(1, hidden_dim)

    wq, bq = lin(keys[0], keys[1])
    wk, bk = lin(keys[2], keys[3])
    wv, bv = lin(keys[4], keys[5])
    wo, bo = lin(keys[6], keys[7])
    return dict(wq=wq, bq=bq, wk=wk, bk=bk, wv=wv, bv=bv, wo=wo, bo=bo)


if __name__ == "__main__":
    N = 8            # number of tokens / samples
    HIDDEN = 32      # hidden_dim
    N_HEADS = 4      # n_heads  (head_dim = 8)

    key = jax.random.PRNGKey(0)
    k_macro, k_micro, k_params = jax.random.split(key, 3)

    macro = jax.random.normal(k_macro, (N, HIDDEN), jnp.float32)
    micro = jax.random.normal(k_micro, (N, HIDDEN), jnp.float32)
    params = init_params(k_params, HIDDEN)

    out = attention_fusion(macro, micro, params, n_heads=N_HEADS)
    out = jax.block_until_ready(out)

    ref = reference_attention_fusion(macro, micro, params, n_heads=N_HEADS)
    assert out.shape == (N, HIDDEN)
    err = float(jnp.max(jnp.abs(out - ref)))
    # approx=True (EUP) softmax reciprocal is slightly less exact than the
    # Newton-refined path, so the tolerance is loosened accordingly.
    assert jnp.allclose(out, ref, atol=2e-3, rtol=2e-3), f"max abs err {err}"

    print("KERNEL_OK")
</pallas_src>

<mosaic_0001>
module attributes {stable_mosaic.version = 11 : i64} {
  func.func @attention_fusion_kernel(%arg0: memref<8x128xf32, #tpu.memory_space<vmem>>, %arg1: memref<8x128xf32, #tpu.memory_space<vmem>>, %arg2: memref<128x128xf32, #tpu.memory_space<vmem>>, %arg3: memref<1x128xf32, #tpu.memory_space<vmem>>, %arg4: memref<128x128xf32, #tpu.memory_space<vmem>>, %arg5: memref<1x128xf32, #tpu.memory_space<vmem>>, %arg6: memref<128x128xf32, #tpu.memory_space<vmem>>, %arg7: memref<1x128xf32, #tpu.memory_space<vmem>>, %arg8: memref<128x128xf32, #tpu.memory_space<vmem>>, %arg9: memref<1x128xf32, #tpu.memory_space<vmem>>, %arg10: memref<8x128xf32, #tpu.memory_space<vmem>>) attributes {dimension_semantics = [], scalar_prefetch = 0 : i64, scratch_operands = 0 : i64, tpu.core_type = #tpu.core_type<tc>} {
    %c0 = arith.constant 0 : index
    %c0_0 = arith.constant 0 : index
    %0 = vector.load %arg0[%c0, %c0_0] : memref<8x128xf32, #tpu.memory_space<vmem>>, vector<8x128xf32>
    %c0_1 = arith.constant 0 : index
    %c0_2 = arith.constant 0 : index
    %1 = vector.load %arg1[%c0_1, %c0_2] : memref<8x128xf32, #tpu.memory_space<vmem>>, vector<8x128xf32>
    %c0_3 = arith.constant 0 : index
    %c0_4 = arith.constant 0 : index
    %2 = vector.load %arg2[%c0_3, %c0_4] : memref<128x128xf32, #tpu.memory_space<vmem>>, vector<128x128xf32>
    %cst = arith.constant dense<0.000000e+00> : vector<8x128xf32>
    %3 = tpu.matmul %0, %2, %cst {dimension_numbers = #tpu.dot_dimension_numbers<[1], [0], [0], [1], [0, 0, 1, 1], [], []>} : vector<8x128xf32>, vector<128x128xf32>, vector<8x128xf32> -> vector<8x128xf32>
    %c0_5 = arith.constant 0 : index
    %c0_6 = arith.constant 0 : index
    %4 = vector.load %arg3[%c0_5, %c0_6] : memref<1x128xf32, #tpu.memory_space<vmem>>, vector<1x128xf32>
    %5 = vector.broadcast %4 : vector<1x128xf32> to vector<8x128xf32>
    %6 = arith.addf %3, %5 : vector<8x128xf32>
    %c0_7 = arith.constant 0 : index
    %c0_8 = arith.constant 0 : index
    %7 = vector.load %arg4[%c0_7, %c0_8] : memref<128x128xf32, #tpu.memory_space<vmem>>, vector<128x128xf32>
    %cst_9 = arith.constant dense<0.000000e+00> : vector<8x128xf32>
    %8 = tpu.matmul %1, %7, %cst_9 {dimension_numbers = #tpu.dot_dimension_numbers<[1], [0], [0], [1], [0, 0, 1, 1], [], []>} : vector<8x128xf32>, vector<128x128xf32>, vector<8x128xf32> -> vector<8x128xf32>
    %c0_10 = arith.constant 0 : index
    %c0_11 = arith.constant 0 : index
    %9 = vector.load %arg5[%c0_10, %c0_11] : memref<1x128xf32, #tpu.memory_space<vmem>>, vector<1x128xf32>
    %10 = vector.broadcast %9 : vector<1x128xf32> to vector<8x128xf32>
    %11 = arith.addf %8, %10 : vector<8x128xf32>
    %c0_12 = arith.constant 0 : index
    %c0_13 = arith.constant 0 : index
    %12 = vector.load %arg6[%c0_12, %c0_13] : memref<128x128xf32, #tpu.memory_space<vmem>>, vector<128x128xf32>
    %cst_14 = arith.constant dense<0.000000e+00> : vector<8x128xf32>
    %13 = tpu.matmul %1, %12, %cst_14 {dimension_numbers = #tpu.dot_dimension_numbers<[1], [0], [0], [1], [0, 0, 1, 1], [], []>} : vector<8x128xf32>, vector<128x128xf32>, vector<8x128xf32> -> vector<8x128xf32>
    %c0_15 = arith.constant 0 : index
    %c0_16 = arith.constant 0 : index
    %14 = vector.load %arg7[%c0_15, %c0_16] : memref<1x128xf32, #tpu.memory_space<vmem>>, vector<1x128xf32>
    %15 = vector.broadcast %14 : vector<1x128xf32> to vector<8x128xf32>
    %16 = arith.addf %13, %15 : vector<8x128xf32>
    %cst_17 = arith.constant 0.000000e+00 : f32
    %17 = vector.broadcast %cst_17 : f32 to vector<8x128xf32>
    %18 = vector.extract_strided_slice %6 {offsets = [0, 0], sizes = [8, 8], strides = [1, 1]} : vector<8x128xf32> to vector<8x8xf32>
    %cst_18 = arith.constant 0.353553385 : f32
    %19 = vector.broadcast %cst_18 : f32 to vector<8x8xf32>
    %20 = arith.mulf %18, %19 : vector<8x8xf32>
    %21 = vector.extract_strided_slice %11 {offsets = [0, 0], sizes = [8, 8], strides = [1, 1]} : vector<8x128xf32> to vector<8x8xf32>
    %22 = vector.extract_strided_slice %16 {offsets = [0, 0], sizes = [8, 8], strides = [1, 1]} : vector<8x128xf32> to vector<8x8xf32>
    %cst_19 = arith.constant dense<0.000000e+00> : vector<8x8xf32>
    %23 = tpu.matmul %20, %21, %cst_19 {dimension_numbers = #tpu.dot_dimension_numbers<[1], [1], [0], [0], [0, 0, 1, 0], [], []>} : vector<8x8xf32>, vector<8x8xf32>, vector<8x8xf32> -> vector<8x8xf32>
    %cst_20 = arith.constant dense<0xFF800000> : vector<8xf32>
    %24 = vector.multi_reduction <maximumf>, %23, %cst_20 [1] : vector<8x8xf32> to vector<8xf32>
    %25 = vector.shape_cast %24 : vector<8xf32> to vector<8x1xf32>
    %26 = vector.broadcast %25 : vector<8x1xf32> to vector<8x8xf32>
    %27 = arith.subf %23, %26 : vector<8x8xf32>
    %28 = math.exp %27 : vector<8x8xf32>
    %cst_21 = arith.constant dense<0.000000e+00> : vector<8xf32>
    %29 = vector.multi_reduction <add>, %28, %cst_21 [1] : vector<8x8xf32> to vector<8xf32>
    %30 = vector.shape_cast %29 : vector<8xf32> to vector<8x1xf32>
    %31 = tpu.reciprocal %30 {approx = true} : vector<8x1xf32> -> vector<8x1xf32>
    %32 = vector.broadcast %31 : vector<8x1xf32> to vector<8x8xf32>
    %33 = arith.mulf %28, %32 : vector<8x8xf32>
    %cst_22 = arith.constant dense<0.000000e+00> : vector<8x8xf32>
    %34 = tpu.matmul %33, %22, %cst_22 {dimension_numbers = #tpu.dot_dimension_numbers<[1], [0], [0], [1], [0, 0, 1, 1], [], []>} : vector<8x8xf32>, vector<8x8xf32>, vector<8x8xf32> -> vector<8x8xf32>
    %c0_23 = arith.constant 0 : index
    %c0_24 = arith.constant 0 : index
    %35 = vector.load %arg8[%c0_23, %c0_24] : memref<128x128xf32, #tpu.memory_space<vmem>>, vector<8x128xf32>
    %cst_25 = arith.constant dense<0.000000e+00> : vector<8x128xf32>
    %36 = tpu.matmul %34, %35, %cst_25 {dimension_numbers = #tpu.dot_dimension_numbers<[1], [0], [0], [1], [0, 0, 1, 1], [], []>} : vector<8x8xf32>, vector<8x128xf32>, vector<8x128xf32> -> vector<8x128xf32>
    %37 = arith.addf %17, %36 : vector<8x128xf32>
    %38 = vector.extract_strided_slice %6 {offsets = [0, 8], sizes = [8, 8], strides = [1, 1]} : vector<8x128xf32> to vector<8x8xf32>
    %cst_26 = arith.constant 0.353553385 : f32
    %39 = vector.broadcast %cst_26 : f32 to vector<8x8xf32>
    %40 = arith.mulf %38, %39 : vector<8x8xf32>
    %41 = vector.extract_strided_slice %11 {offsets = [0, 8], sizes = [8, 8], strides = [1, 1]} : vector<8x128xf32> to vector<8x8xf32>
    %42 = vector.extract_strided_slice %16 {offsets = [0, 8], sizes = [8, 8], strides = [1, 1]} : vector<8x128xf32> to vector<8x8xf32>
    %cst_27 = arith.constant dense<0.000000e+00> : vector<8x8xf32>
    %43 = tpu.matmul %40, %41, %cst_27 {dimension_numbers = #tpu.dot_dimension_numbers<[1], [1], [0], [0], [0, 0, 1, 0], [], []>} : vector<8x8xf32>, vector<8x8xf32>, vector<8x8xf32> -> vector<8x8xf32>
    %cst_28 = arith.constant dense<0xFF800000> : vector<8xf32>
    %44 = vector.multi_reduction <maximumf>, %43, %cst_28 [1] : vector<8x8xf32> to vector<8xf32>
    %45 = vector.shape_cast %44 : vector<8xf32> to vector<8x1xf32>
    %46 = vector.broadcast %45 : vector<8x1xf32> to vector<8x8xf32>
    %47 = arith.subf %43, %46 : vector<8x8xf32>
    %48 = math.exp %47 : vector<8x8xf32>
    %cst_29 = arith.constant dense<0.000000e+00> : vector<8xf32>
    %49 = vector.multi_reduction <add>, %48, %cst_29 [1] : vector<8x8xf32> to vector<8xf32>
    %50 = vector.shape_cast %49 : vector<8xf32> to vector<8x1xf32>
    %51 = tpu.reciprocal %50 {approx = true} : vector<8x1xf32> -> vector<8x1xf32>
    %52 = vector.broadcast %51 : vector<8x1xf32> to vector<8x8xf32>
    %53 = arith.mulf %48, %52 : vector<8x8xf32>
    %cst_30 = arith.constant dense<0.000000e+00> : vector<8x8xf32>
    %54 = tpu.matmul %53, %42, %cst_30 {dimension_numbers = #tpu.dot_dimension_numbers<[1], [0], [0], [1], [0, 0, 1, 1], [], []>} : vector<8x8xf32>, vector<8x8xf32>, vector<8x8xf32> -> vector<8x8xf32>
    %c8 = arith.constant 8 : index
    %c0_31 = arith.constant 0 : index
    %55 = vector.load %arg8[%c8, %c0_31] : memref<128x128xf32, #tpu.memory_space<vmem>>, vector<8x128xf32>
    %cst_32 = arith.constant dense<0.000000e+00> : vector<8x128xf32>
    %56 = tpu.matmul %54, %55, %cst_32 {dimension_numbers = #tpu.dot_dimension_numbers<[1], [0], [0], [1], [0, 0, 1, 1], [], []>} : vector<8x8xf32>, vector<8x128xf32>, vector<8x128xf32> -> vector<8x128xf32>
    %57 = arith.addf %37, %56 : vector<8x128xf32>
    %58 = vector.extract_strided_slice %6 {offsets = [0, 16], sizes = [8, 8], strides = [1, 1]} : vector<8x128xf32> to vector<8x8xf32>
    %cst_33 = arith.constant 0.353553385 : f32
    %59 = vector.broadcast %cst_33 : f32 to vector<8x8xf32>
    %60 = arith.mulf %58, %59 : vector<8x8xf32>
    %61 = vector.extract_strided_slice %11 {offsets = [0, 16], sizes = [8, 8], strides = [1, 1]} : vector<8x128xf32> to vector<8x8xf32>
    %62 = vector.extract_strided_slice %16 {offsets = [0, 16], sizes = [8, 8], strides = [1, 1]} : vector<8x128xf32> to vector<8x8xf32>
    %cst_34 = arith.constant dense<0.000000e+00> : vector<8x8xf32>
    %63 = tpu.matmul %60, %61, %cst_34 {dimension_numbers = #tpu.dot_dimension_numbers<[1], [1], [0], [0], [0, 0, 1, 0], [], []>} : vector<8x8xf32>, vector<8x8xf32>, vector<8x8xf32> -> vector<8x8xf32>
    %cst_35 = arith.constant dense<0xFF800000> : vector<8xf32>
    %64 = vector.multi_reduction <maximumf>, %63, %cst_35 [1] : vector<8x8xf32> to vector<8xf32>
    %65 = vector.shape_cast %64 : vector<8xf32> to vector<8x1xf32>
    %66 = vector.broadcast %65 : vector<8x1xf32> to vector<8x8xf32>
    %67 = arith.subf %63, %66 : vector<8x8xf32>
    %68 = math.exp %67 : vector<8x8xf32>
    %cst_36 = arith.constant dense<0.000000e+00> : vector<8xf32>
    %69 = vector.multi_reduction <add>, %68, %cst_36 [1] : vector<8x8xf32> to vector<8xf32>
    %70 = vector.shape_cast %69 : vector<8xf32> to vector<8x1xf32>
    %71 = tpu.reciprocal %70 {approx = true} : vector<8x1xf32> -> vector<8x1xf32>
    %72 = vector.broadcast %71 : vector<8x1xf32> to vector<8x8xf32>
    %73 = arith.mulf %68, %72 : vector<8x8xf32>
    %cst_37 = arith.constant dense<0.000000e+00> : vector<8x8xf32>
    %74 = tpu.matmul %73, %62, %cst_37 {dimension_numbers = #tpu.dot_dimension_numbers<[1], [0], [0], [1], [0, 0, 1, 1], [], []>} : vector<8x8xf32>, vector<8x8xf32>, vector<8x8xf32> -> vector<8x8xf32>
    %c16 = arith.constant 16 : index
    %c0_38 = arith.constant 0 : index
    %75 = vector.load %arg8[%c16, %c0_38] : memref<128x128xf32, #tpu.memory_space<vmem>>, vector<8x128xf32>
    %cst_39 = arith.constant dense<0.000000e+00> : vector<8x128xf32>
    %76 = tpu.matmul %74, %75, %cst_39 {dimension_numbers = #tpu.dot_dimension_numbers<[1], [0], [0], [1], [0, 0, 1, 1], [], []>} : vector<8x8xf32>, vector<8x128xf32>, vector<8x128xf32> -> vector<8x128xf32>
    %77 = arith.addf %57, %76 : vector<8x128xf32>
    %78 = vector.extract_strided_slice %6 {offsets = [0, 24], sizes = [8, 8], strides = [1, 1]} : vector<8x128xf32> to vector<8x8xf32>
    %cst_40 = arith.constant 0.353553385 : f32
    %79 = vector.broadcast %cst_40 : f32 to vector<8x8xf32>
    %80 = arith.mulf %78, %79 : vector<8x8xf32>
    %81 = vector.extract_strided_slice %11 {offsets = [0, 24], sizes = [8, 8], strides = [1, 1]} : vector<8x128xf32> to vector<8x8xf32>
    %82 = vector.extract_strided_slice %16 {offsets = [0, 24], sizes = [8, 8], strides = [1, 1]} : vector<8x128xf32> to vector<8x8xf32>
    %cst_41 = arith.constant dense<0.000000e+00> : vector<8x8xf32>
    %83 = tpu.matmul %80, %81, %cst_41 {dimension_numbers = #tpu.dot_dimension_numbers<[1], [1], [0], [0], [0, 0, 1, 0], [], []>} : vector<8x8xf32>, vector<8x8xf32>, vector<8x8xf32> -> vector<8x8xf32>
    %cst_42 = arith.constant dense<0xFF800000> : vector<8xf32>
    %84 = vector.multi_reduction <maximumf>, %83, %cst_42 [1] : vector<8x8xf32> to vector<8xf32>
    %85 = vector.shape_cast %84 : vector<8xf32> to vector<8x1xf32>
    %86 = vector.broadcast %85 : vector<8x1xf32> to vector<8x8xf32>
    %87 = arith.subf %83, %86 : vector<8x8xf32>
    %88 = math.exp %87 : vector<8x8xf32>
    %cst_43 = arith.constant dense<0.000000e+00> : vector<8xf32>
    %89 = vector.multi_reduction <add>, %88, %cst_43 [1] : vector<8x8xf32> to vector<8xf32>
    %90 = vector.shape_cast %89 : vector<8xf32> to vector<8x1xf32>
    %91 = tpu.reciprocal %90 {approx = true} : vector<8x1xf32> -> vector<8x1xf32>
    %92 = vector.broadcast %91 : vector<8x1xf32> to vector<8x8xf32>
    %93 = arith.mulf %88, %92 : vector<8x8xf32>
    %cst_44 = arith.constant dense<0.000000e+00> : vector<8x8xf32>
    %94 = tpu.matmul %93, %82, %cst_44 {dimension_numbers = #tpu.dot_dimension_numbers<[1], [0], [0], [1], [0, 0, 1, 1], [], []>} : vector<8x8xf32>, vector<8x8xf32>, vector<8x8xf32> -> vector<8x8xf32>
    %c24 = arith.constant 24 : index
    %c0_45 = arith.constant 0 : index
    %95 = vector.load %arg8[%c24, %c0_45] : memref<128x128xf32, #tpu.memory_space<vmem>>, vector<8x128xf32>
    %cst_46 = arith.constant dense<0.000000e+00> : vector<8x128xf32>
    %96 = tpu.matmul %94, %95, %cst_46 {dimension_numbers = #tpu.dot_dimension_numbers<[1], [0], [0], [1], [0, 0, 1, 1], [], []>} : vector<8x8xf32>, vector<8x128xf32>, vector<8x128xf32> -> vector<8x128xf32>
    %97 = arith.addf %77, %96 : vector<8x128xf32>
    %c0_47 = arith.constant 0 : index
    %c0_48 = arith.constant 0 : index
    %98 = vector.load %arg9[%c0_47, %c0_48] : memref<1x128xf32, #tpu.memory_space<vmem>>, vector<1x128xf32>
    %99 = vector.broadcast %98 : vector<1x128xf32> to vector<8x128xf32>
    %100 = arith.addf %97, %99 : vector<8x128xf32>
    %c0_49 = arith.constant 0 : index
    %c0_50 = arith.constant 0 : index
    %101 = vector.load %arg10[%c0_49, %c0_50] : memref<8x128xf32, #tpu.memory_space<vmem>>, vector<8x128xf32>
    tpu.vector_store %arg10[%c0_49, %c0_50], %100 {strides = array<i32>} : memref<8x128xf32, #tpu.memory_space<vmem>>, vector<8x128xf32>,
    return
  }
}

</mosaic_0001>

<llo_original>
// kernel: tpu_custom_call.1
$region0: #{tpu_custom_call.1}
  #allocation0 [shape = 'u32[]', space=smem, size = 0x4, offset = 0x4, fixed_abs, tag = 'smem constant byte address 0x4 - core index']
  #allocation1 [shape = 'u32[72,128]{1,0:T(1,128)}', space=vmem, size = 0x9000, scoped, tag = 'internal scratch']
  %s0 = inlined_call_operand.hbm [shape: f32[8,128], index: 0, kind: input, shape index: {}]
  %s1 = inlined_call_operand.hbm [shape: f32[8,128], index: 1, kind: input, shape index: {}]
  %s2 = inlined_call_operand.hbm [shape: f32[128,128], index: 2, kind: input, shape index: {}]
  %s3 = inlined_call_operand.vmem [shape: f32[1,128], index: 3, kind: input, shape index: {}]
  %s4 = inlined_call_operand.hbm [shape: f32[128,128], index: 4, kind: input, shape index: {}]
  %s5 = inlined_call_operand.vmem [shape: f32[1,128], index: 5, kind: input, shape index: {}]
  %s6 = inlined_call_operand.hbm [shape: f32[128,128], index: 6, kind: input, shape index: {}]
  %s7 = inlined_call_operand.vmem [shape: f32[1,128], index: 7, kind: input, shape index: {}]
  %s8 = inlined_call_operand.hbm [shape: f32[128,128], index: 8, kind: input, shape index: {}]
  %s9 = inlined_call_operand.vmem [shape: f32[1,128], index: 9, kind: input, shape index: {}]
  %s10 = inlined_call_operand.hbm [shape: f32[8,128], index: 10, kind: output, shape index: {}]
  %s11 = sld [smem:[#allocation0]]
  $region74: #{tpu_custom_call.1} parent=0
    _
  %s13 = ssub.s32 1, %s11
  %s14 = scalar_select 0, %s13, %s11
  $region1: #{tpu_custom_call.1} parent=0
    #allocation2 [shape = 'u8[4096]{0}', space=vmem, size = 0x1000, scoped, tag = 'input window, operand 0, single buffered']
    #allocation3 [shape = 's32[1]{0}', space=sflag, size = 0x4, scoped, tag = 'scoped memory for tpu_custom_call.1']
    #allocation4 [shape = 's32[1]{0}', space=sflag, size = 0x4, scoped, tag = 'scoped memory for tpu_custom_call.1']
    #allocation5 [shape = 'u8[4096]{0}', space=vmem, size = 0x1000, scoped, tag = 'input window, operand 1, single buffered']
    #allocation6 [shape = 's32[1]{0}', space=sflag, size = 0x4, scoped, tag = 'scoped memory for tpu_custom_call.1']
    #allocation7 [shape = 'u8[65536]{0}', space=vmem, size = 0x10000, scoped, tag = 'input window, operand 2, single buffered']
    #allocation8 [shape = 'u8[65536]{0}', space=vmem, size = 0x10000, scoped, tag = 'input window, operand 4, single buffered']
    #allocation9 [shape = 's32[1]{0}', space=sflag, size = 0x4, scoped, tag = 'scoped memory for tpu_custom_call.1']
    #allocation10 [shape = 'u8[65536]{0}', space=vmem, size = 0x10000, scoped, tag = 'input window, operand 6, single buffered']
    #allocation11 [shape = 'u8[65536]{0}', space=vmem, size = 0x10000, scoped, tag = 'input window, operand 8, single buffered']
    #allocation12 [shape = 's32[1]{0}', space=sflag, size = 0x4, scoped, tag = 'scoped memory for tpu_custom_call.1']
    #allocation13 [shape = 'u8[4096]{0}', space=vmem, size = 0x1000, scoped, tag = 'output window, operand 0, single buffered']
    %15 = vsyncpa [#allocation3], 0
    %16 = vsyncpa [#allocation6], 0
    %17 = vsyncpa [#allocation9], 0
    %18 = vsyncpa [#allocation12], 0
    %19 = vsyncpa [#allocation4], 0
    // Predicated region
    $region2: #{tpu_custom_call.1} parent=1 // pred_check
      _
    $region3: #{tpu_custom_call.1} parent=1 // pred_check_branch
      %21 = sbr.rel (0) target = $region5
    $region4: #{tpu_custom_call.1} parent=1 // pred_region
      %23 = vsyncadd [#allocation3], 0
      %s25 = sshll.u32 %s0, 4
      %s26 = int_to_ptr.hbm [resolvable:$true] %s25
      %s27 = sshll.u32 [#allocation2], 4
      %s28 = int_to_ptr.vmem [resolvable:$true] %s27
      %30 = dma.hbm_to_vmem [thread:$0]  %s26, 128, %s28, [#allocation3]
    $region5: #{tpu_custom_call.1} parent=1 // pred_fallthru
      _
    // Predicated region
    $region6: #{tpu_custom_call.1} parent=1 // pred_check
      _
    $region7: #{tpu_custom_call.1} parent=1 // pred_check_branch
      %32 = sbr.rel (0) target = $region9
    $region8: #{tpu_custom_call.1} parent=1 // pred_region
      %34 = vsyncadd [#allocation6], 0
      %s36 = sshll.u32 %s1, 4
      %s37 = int_to_ptr.hbm [resolvable:$true] %s36
      %s38 = sshll.u32 [#allocation5], 4
      %s39 = int_to_ptr.vmem [resolvable:$true] %s38
      %41 = dma.hbm_to_vmem [thread:$0]  %s37, 128, %s39, [#allocation6]
    $region9: #{tpu_custom_call.1} parent=1 // pred_fallthru
      _
    // Predicated region
    $region10: #{tpu_custom_call.1} parent=1 // pred_check
      _
    $region11: #{tpu_custom_call.1} parent=1 // pred_check_branch
      %43 = sbr.rel (0) target = $region13
    $region12: #{tpu_custom_call.1} parent=1 // pred_region
      %45 = vsyncadd [#allocation6], 0
      %s46 = sshll.u32 %s2, 4
      %s47 = int_to_ptr.hbm [resolvable:$true] %s46
      %s48 = sshll.u32 [#allocation7], 4
      %s49 = int_to_ptr.vmem [resolvable:$true] %s48
      %54 = dma.hbm_to_vmem [thread:$0]  %s47, 2048, %s49, [#allocation6], 128, 128, 8
    $region13: #{tpu_custom_call.1} parent=1 // pred_fallthru
      _
    // Predicated region
    $region14: #{tpu_custom_call.1} parent=1 // pred_check
      _
    $region15: #{tpu_custom_call.1} parent=1 // pred_check_branch
      %56 = sbr.rel (0) target = $region17
    $region16: #{tpu_custom_call.1} parent=1 // pred_region
      _
    $region17: #{tpu_custom_call.1} parent=1 // pred_fallthru
      _
    // Predicated region
    $region18: #{tpu_custom_call.1} parent=1 // pred_check
      _
    $region19: #{tpu_custom_call.1} parent=1 // pred_check_branch
      %58 = sbr.rel (0) target = $region21
    $region20: #{tpu_custom_call.1} parent=1 // pred_region
      %60 = vsyncadd [#allocation9], 0
      %s61 = sshll.u32 %s4, 4
      %s62 = int_to_ptr.hbm [resolvable:$true] %s61
      %s63 = sshll.u32 [#allocation8], 4
      %s64 = int_to_ptr.vmem [resolvable:$true] %s63
      %69 = dma.hbm_to_vmem [thread:$0]  %s62, 2048, %s64, [#allocation9], 128, 128, 8
    $region21: #{tpu_custom_call.1} parent=1 // pred_fallthru
      _
    // Predicated region
    $region22: #{tpu_custom_call.1} parent=1 // pred_check
      _
    $region23: #{tpu_custom_call.1} parent=1 // pred_check_branch
      %71 = sbr.rel (0) target = $region25
    $region24: #{tpu_custom_call.1} parent=1 // pred_region
      _
    $region25: #{tpu_custom_call.1} parent=1 // pred_fallthru
      _
    // Predicated region
    $region26: #{tpu_custom_call.1} parent=1 // pred_check
      _
    $region27: #{tpu_custom_call.1} parent=1 // pred_check_branch
      %73 = sbr.rel (0) target = $region29
    $region28: #{tpu_custom_call.1} parent=1 // pred_region
      %75 = vsyncadd [#allocation9], 0
      %s76 = sshll.u32 %s6, 4
      %s77 = int_to_ptr.hbm [resolvable:$true] %s76
      %s78 = sshll.u32 [#allocation10], 4
      %s79 = int_to_ptr.vmem [resolvable:$true] %s78
      %84 = dma.hbm_to_vmem [thread:$0]  %s77, 2048, %s79, [#allocation9], 128, 128, 8
    $region29: #{tpu_custom_call.1} parent=1 // pred_fallthru
      _
    // Predicated region
    $region30: #{tpu_custom_call.1} parent=1 // pred_check
      _
    $region31: #{tpu_custom_call.1} parent=1 // pred_check_branch
      %86 = sbr.rel (0) target = $region33
    $region32: #{tpu_custom_call.1} parent=1 // pred_region
      _
    $region33: #{tpu_custom_call.1} parent=1 // pred_fallthru
      _
    // Predicated region
    $region34: #{tpu_custom_call.1} parent=1 // pred_check
      _
    $region35: #{tpu_custom_call.1} parent=1 // pred_check_branch
      %88 = sbr.rel (0) target = $region37
    $region36: #{tpu_custom_call.1} parent=1 // pred_region
      %90 = vsyncadd [#allocation12], 0
      %s91 = sshll.u32 %s8, 4
      %s92 = int_to_ptr.hbm [resolvable:$true] %s91
      %s93 = sshll.u32 [#allocation11], 4
      %s94 = int_to_ptr.vmem [resolvable:$true] %s93
      %99 = dma.hbm_to_vmem [thread:$0]  %s92, 2048, %s94, [#allocation12], 128, 128, 8
    $region37: #{tpu_custom_call.1} parent=1 // pred_fallthru
      _
    // Predicated region
    $region38: #{tpu_custom_call.1} parent=1 // pred_check
      _
    $region39: #{tpu_custom_call.1} parent=1 // pred_check_branch
      %101 = sbr.rel (0) target = $region41
    $region40: #{tpu_custom_call.1} parent=1 // pred_region
      _
    $region41: #{tpu_custom_call.1} parent=1 // pred_fallthru
      _
    // Predicated region
    $region42: #{tpu_custom_call.1} parent=1 // pred_check
      _
    $region43: #{tpu_custom_call.1} parent=1 // pred_check_branch
      %103 = sbr.rel (0) target = $region45
    $region44: #{tpu_custom_call.1} parent=1 // pred_region
      %105 = dma.done [#allocation3], 128
    $region45: #{tpu_custom_call.1} parent=1 // pred_fallthru
      _
    // Predicated region
    $region46: #{tpu_custom_call.1} parent=1 // pred_check
      _
    $region47: #{tpu_custom_call.1} parent=1 // pred_check_branch
      %107 = sbr.rel (0) target = $region49
    $region48: #{tpu_custom_call.1} parent=1 // pred_region
      %109 = dma.done [#allocation6], 128
    $region49: #{tpu_custom_call.1} parent=1 // pred_fallthru
      _
    // Predicated region
    $region50: #{tpu_custom_call.1} parent=1 // pred_check
      _
    $region51: #{tpu_custom_call.1} parent=1 // pred_check_branch
      %111 = sbr.rel (0) target = $region53
    $region52: #{tpu_custom_call.1} parent=1 // pred_region
      %113 = dma.done [#allocation6], 2048
    $region53: #{tpu_custom_call.1} parent=1 // pred_fallthru
      _
    // Predicated region
    $region54: #{tpu_custom_call.1} parent=1 // pred_check
      _
    $region55: #{tpu_custom_call.1} parent=1 // pred_check_branch
      %115 = sbr.rel (0) target = $region57
    $region56: #{tpu_custom_call.1} parent=1 // pred_region
      %117 = dma.done [#allocation9], 2048
    $region57: #{tpu_custom_call.1} parent=1 // pred_fallthru
      _
    // Predicated region
    $region58: #{tpu_custom_call.1} parent=1 // pred_check
      _
    $region59: #{tpu_custom_call.1} parent=1 // pred_check_branch
      %119 = sbr.rel (0) target = $region61
    $region60: #{tpu_custom_call.1} parent=1 // pred_region
      %121 = dma.done [#allocation9], 2048
    $region61: #{tpu_custom_call.1} parent=1 // pred_fallthru
      _
    // Predicated region
    $region62: #{tpu_custom_call.1} parent=1 // pred_check
      _
    $region63: #{tpu_custom_call.1} parent=1 // pred_check_branch
      %123 = sbr.rel (0) target = $region65
    $region64: #{tpu_custom_call.1} parent=1 // pred_region
      %125 = dma.done [#allocation12], 2048
    $region65: #{tpu_custom_call.1} parent=1 // pred_fallthru
      _
    %v126 = vld [vmem:[#allocation2] sm:$0xff]
    %v127 = vld [vmem:[#allocation5] sm:$0xff]
    %v128 = vld [vmem:[#allocation7] sm:$0xff]
    %v129 = vld [vmem:[#allocation7 + $0x8] sm:$0xff]
    %v130 = vld [vmem:[#allocation7 + $0x10] sm:$0xff]
    %v131 = vld [vmem:[#allocation7 + $0x18] sm:$0xff]
    %v132 = vld [vmem:[#allocation7 + $0x20] sm:$0xff]
    %v133 = vld [vmem:[#allocation7 + $0x28] sm:$0xff]
    %v134 = vld [vmem:[#allocation7 + $0x30] sm:$0xff]
    %v135 = vld [vmem:[#allocation7 + $0x38] sm:$0xff]
    %v136 = vld [vmem:[#allocation7 + $0x40] sm:$0xff]
    %v137 = vld [vmem:[#allocation7 + $0x48] sm:$0xff]
    %v138 = vld [vmem:[#allocation7 + $0x50] sm:$0xff]
    %v139 = vld [vmem:[#allocation7 + $0x58] sm:$0xff]
    %v140 = vld [vmem:[#allocation7 + $0x60] sm:$0xff]
    %v141 = vld [vmem:[#allocation7 + $0x68] sm:$0xff]
    %v142 = vld [vmem:[#allocation7 + $0x70] sm:$0xff]
    %v143 = vld [vmem:[#allocation7 + $0x78] sm:$0xff]
    %v144 = vld [vmem:[%s3] sm:$0x1]
    %v146 = vperm.slane %v144, 0
    %148 = vmatpush.msra.mxu0 %v143
    %149 = vmatpush.msra.mxu0 %v142
    %150 = vmatpush.msra.mxu0 %v141
    %151 = vmatpush.msra.mxu0 %v140
    %152 = vmatpush.msra.mxu0 %v139
    %153 = vmatpush.msra.mxu0 %v138
    %154 = vmatpush.msra.mxu0 %v137
    %155 = vmatpush.msra.mxu0 %v136
    %156 = vmatpush.msra.mxu0 %v135
    %157 = vmatpush.msra.mxu0 %v134
    %158 = vmatpush.msra.mxu0 %v133
    %159 = vmatpush.msra.mxu0 %v132
    %160 = vmatpush.msra.mxu0 %v131
    %161 = vmatpush.msra.mxu0 %v130
    %162 = vmatpush.msra.mxu0 %v129
    %163 = vmatpush.msra.mxu0 %v128
    %164 = vmatmul.f32.gmra.mxu0 %v126
    %v165 = vpop.f32.mrf.mxu0
    %v166 = vadd.f32 %v146, %v165
    %167 = vdwg.mxu0
    %v168 = vld [vmem:[#allocation8] sm:$0xff]
    %v169 = vld [vmem:[#allocation8 + $0x8] sm:$0xff]
    %v170 = vld [vmem:[#allocation8 + $0x10] sm:$0xff]
    %v171 = vld [vmem:[#allocation8 + $0x18] sm:$0xff]
    %v172 = vld [vmem:[#allocation8 + $0x20] sm:$0xff]
    %v173 = vld [vmem:[#allocation8 + $0x28] sm:$0xff]
    %v174 = vld [vmem:[#allocation8 + $0x30] sm:$0xff]
    %v175 = vld [vmem:[#allocation8 + $0x38] sm:$0xff]
    %v176 = vld [vmem:[#allocation8 + $0x40] sm:$0xff]
    %v177 = vld [vmem:[#allocation8 + $0x48] sm:$0xff]
    %v178 = vld [vmem:[#allocation8 + $0x50] sm:$0xff]
    %v179 = vld [vmem:[#allocation8 + $0x58] sm:$0xff]
    %v180 = vld [vmem:[#allocation8 + $0x60] sm:$0xff]
    %v181 = vld [vmem:[#allocation8 + $0x68] sm:$0xff]
    %v182 = vld [vmem:[#allocation8 + $0x70] sm:$0xff]
    %v183 = vld [vmem:[#allocation8 + $0x78] sm:$0xff]
    %v184 = vld [vmem:[%s5] sm:$0x1]
    %v186 = vperm.slane %v184, 0
    %188 = vmatpush.msra.mxu0 %v183
    %189 = vmatpush.msra.mxu0 %v182
    %190 = vmatpush.msra.mxu0 %v181
    %191 = vmatpush.msra.mxu0 %v180
    %192 = vmatpush.msra.mxu0 %v179
    %193 = vmatpush.msra.mxu0 %v178
    %194 = vmatpush.msra.mxu0 %v177
    %195 = vmatpush.msra.mxu0 %v176
    %196 = vmatpush.msra.mxu0 %v175
    %197 = vmatpush.msra.mxu0 %v174
    %198 = vmatpush.msra.mxu0 %v173
    %199 = vmatpush.msra.mxu0 %v172
    %200 = vmatpush.msra.mxu0 %v171
    %201 = vmatpush.msra.mxu0 %v170
    %202 = vmatpush.msra.mxu0 %v169
    %203 = vmatpush.msra.mxu0 %v168
    %204 = vmatmul.f32.gmra.mxu0 %v127
    %v205 = vpop.f32.mrf.mxu0
    %v206 = vadd.f32 %v186, %v205
    %207 = vdwg.mxu0
    %v208 = vld [vmem:[#allocation10] sm:$0xff]
    %v209 = vld [vmem:[#allocation10 + $0x8] sm:$0xff]
    %v210 = vld [vmem:[#allocation10 + $0x10] sm:$0xff]
    %v211 = vld [vmem:[#allocation10 + $0x18] sm:$0xff]
    %v212 = vld [vmem:[#allocation10 + $0x20] sm:$0xff]
    %v213 = vld [vmem:[#allocation10 + $0x28] sm:$0xff]
    %v214 = vld [vmem:[#allocation10 + $0x30] sm:$0xff]
    %v215 = vld [vmem:[#allocation10 + $0x38] sm:$0xff]
    %v216 = vld [vmem:[#allocation10 + $0x40] sm:$0xff]
    %v217 = vld [vmem:[#allocation10 + $0x48] sm:$0xff]
    %v218 = vld [vmem:[#allocation10 + $0x50] sm:$0xff]
    %v219 = vld [vmem:[#allocation10 + $0x58] sm:$0xff]
    %v220 = vld [vmem:[#allocation10 + $0x60] sm:$0xff]
    %v221 = vld [vmem:[#allocation10 + $0x68] sm:$0xff]
    %v222 = vld [vmem:[#allocation10 + $0x70] sm:$0xff]
    %v223 = vld [vmem:[#allocation10 + $0x78] sm:$0xff]
    %v224 = vld [vmem:[%s7] sm:$0x1]
    %v226 = vperm.slane %v224, 0
    %228 = vmatpush.msra.mxu0 %v223
    %229 = vmatpush.msra.mxu0 %v222
    %230 = vmatpush.msra.mxu0 %v221
    %231 = vmatpush.msra.mxu0 %v220
    %232 = vmatpush.msra.mxu0 %v219
    %233 = vmatpush.msra.mxu0 %v218
    %234 = vmatpush.msra.mxu0 %v217
    %235 = vmatpush.msra.mxu0 %v216
    %236 = vmatpush.msra.mxu0 %v215
    %237 = vmatpush.msra.mxu0 %v214
    %238 = vmatpush.msra.mxu0 %v213
    %239 = vmatpush.msra.mxu0 %v212
    %240 = vmatpush.msra.mxu0 %v211
    %241 = vmatpush.msra.mxu0 %v210
    %242 = vmatpush.msra.mxu0 %v209
    %243 = vmatpush.msra.mxu0 %v208
    %244 = vmatmul.f32.gmra.mxu0 %v127
    %v245 = vpop.f32.mrf.mxu0
    %v246 = vadd.f32 %v226, %v245
    %247 = vdwg.mxu0
    %v248 = vmul.f32 %v166, 0.35355338
    %vm249 = vcmask 64512
    %v251 = vsel %vm249, %v248, 0
    %v254 = vsel %vm249, %v206, 0
    %256 = vmatpush.xpose.msra.mxu0 0.0
    %257 = vmatpush.xpose.msra.mxu0 0.0
    %258 = vmatpush.xpose.msra.mxu0 0.0
    %259 = vmatpush.xpose.msra.mxu0 0.0
    %260 = vmatpush.xpose.msra.mxu0 0.0
    %261 = vmatpush.xpose.msra.mxu0 0.0
    %262 = vmatpush.xpose.msra.mxu0 0.0
    %263 = vmatpush.xpose.msra.mxu0 0.0
    %264 = vmatpush.xpose.msra.mxu0 0.0
    %265 = vmatpush.xpose.msra.mxu0 0.0
    %266 = vmatpush.xpose.msra.mxu0 0.0
    %267 = vmatpush.xpose.msra.mxu0 0.0
    %268 = vmatpush.xpose.msra.mxu0 0.0
    %269 = vmatpush.xpose.msra.mxu0 0.0
    %270 = vmatpush.xpose.msra.mxu0 0.0
    %271 = vmatpush.xpose.msra.mxu0 %v254
    %272 = vmatmul.f32.gmra.mxu0 %v251
    %v273 = vpop.f32.mrf.mxu0
    %v274 = vadd.f32 0.0, %v273
    %275 = vdwg.mxu0
    %v276 = vsel %vm249, %v274, -inf
    %277 = vmax.xlane.f32.xlu0 %v276
    %v278 = vpop.xlane.xlu0 %277
    %v279 = vsub.f32 %v274, %v278
    %v280 = vmul.f32 %v279, 1.442695
    %v281 = vpow.pop %v280
    %v282 = vsel %vm249, %v281, 0.0
    %283 = vadd.xlane.f32.xlu0 %v282
    %v284 = vpop.xlane.xlu0 %283
    %v285 = vrcp.pop %v284
    %v286 = vmul.f32 %v281, %v285
    %v288 = vsel %vm249, %v286, 0
    %290 = vmatpush.msra.mxu0 0.0
    %291 = vmatpush.msra.mxu0 0.0
    %292 = vmatpush.msra.mxu0 0.0
    %293 = vmatpush.msra.mxu0 0.0
    %294 = vmatpush.msra.mxu0 0.0
    %295 = vmatpush.msra.mxu0 0.0
    %296 = vmatpush.msra.mxu0 0.0
    %297 = vmatpush.msra.mxu0 0.0
    %298 = vmatpush.msra.mxu0 0.0
    %299 = vmatpush.msra.mxu0 0.0
    %300 = vmatpush.msra.mxu0 0.0
    %301 = vmatpush.msra.mxu0 0.0
    %302 = vmatpush.msra.mxu0 0.0
    %303 = vmatpush.msra.mxu0 0.0
    %304 = vmatpush.msra.mxu0 0.0
    %305 = vmatpush.msra.mxu0 %v246
    %306 = vmatmul.f32.gmra.mxu0 %v288
    %v307 = vpop.f32.mrf.mxu0
    %v308 = vadd.f32 0.0, %v307
    %309 = vdwg.mxu0
    %v310 = vld [vmem:[#allocation11] sm:$0xff]
    %311 = vrot.lane.b32.xlu0 %v248, 120
    %v312 = vpop.permute.xlu0 %311
    %313 = vrot.lane.b32.xlu0 %v206, 120
    %v314 = vpop.permute.xlu0 %313
    %v315 = vsel %vm249, %v312, 0
    %v317 = vsel %vm249, %v314, 0
    %319 = vmatpush.xpose.msra.mxu0 0.0
    %320 = vmatpush.xpose.msra.mxu0 0.0
    %321 = vmatpush.xpose.msra.mxu0 0.0
    %322 = vmatpush.xpose.msra.mxu0 0.0
    %323 = vmatpush.xpose.msra.mxu0 0.0
    %324 = vmatpush.xpose.msra.mxu0 0.0
    %325 = vmatpush.xpose.msra.mxu0 0.0
    %326 = vmatpush.xpose.msra.mxu0 0.0
    %327 = vmatpush.xpose.msra.mxu0 0.0
    %328 = vmatpush.xpose.msra.mxu0 0.0
    %329 = vmatpush.xpose.msra.mxu0 0.0
    %330 = vmatpush.xpose.msra.mxu0 0.0
    %331 = vmatpush.xpose.msra.mxu0 0.0
    %332 = vmatpush.xpose.msra.mxu0 0.0
    %333 = vmatpush.xpose.msra.mxu0 0.0
    %334 = vmatpush.xpose.msra.mxu0 %v317
    %335 = vmatmul.f32.gmra.mxu0 %v315
    %v336 = vpop.f32.mrf.mxu0
    %v337 = vadd.f32 0.0, %v336
    %338 = vdwg.mxu0
    %v339 = vsel %vm249, %v337, -inf
    %340 = vmax.xlane.f32.xlu0 %v339
    %v341 = vpop.xlane.xlu0 %340
    %v342 = vsub.f32 %v337, %v341
    %v343 = vmul.f32 %v342, 1.442695
    %v344 = vpow.pop %v343
    %v345 = vsel %vm249, %v344, 0.0
    %346 = vadd.xlane.f32.xlu0 %v345
    %v347 = vpop.xlane.xlu0 %346
    %v348 = vrcp.pop %v347
    %v349 = vmul.f32 %v344, %v348
    %351 = vrot.lane.b32.xlu0 %v246, 120
    %v352 = vpop.permute.xlu0 %351
    %v355 = vsel %vm249, %v349, 0
    %357 = vmatpush.msra.mxu0 0.0
    %358 = vmatpush.msra.mxu0 0.0
    %359 = vmatpush.msra.mxu0 0.0
    %360 = vmatpush.msra.mxu0 0.0
    %361 = vmatpush.msra.mxu0 0.0
    %362 = vmatpush.msra.mxu0 0.0
    %363 = vmatpush.msra.mxu0 0.0
    %364 = vmatpush.msra.mxu0 0.0
    %365 = vmatpush.msra.mxu0 0.0
    %366 = vmatpush.msra.mxu0 0.0
    %367 = vmatpush.msra.mxu0 0.0
    %368 = vmatpush.msra.mxu0 0.0
    %369 = vmatpush.msra.mxu0 0.0
    %370 = vmatpush.msra.mxu0 0.0
    %371 = vmatpush.msra.mxu0 0.0
    %372 = vmatpush.msra.mxu0 %v352
    %373 = vmatmul.f32.gmra.mxu0 %v355
    %v374 = vpop.f32.mrf.mxu0
    %v375 = vadd.f32 0.0, %v374
    %376 = vdwg.mxu0
    %v377 = vld [vmem:[#allocation11 + $0x8] sm:$0xff]
    %v379 = vsel %vm249, %v375, 0
    %381 = vmatpush.msra.mxu0 0.0
    %382 = vmatpush.msra.mxu0 0.0
    %383 = vmatpush.msra.mxu0 0.0
    %384 = vmatpush.msra.mxu0 0.0
    %385 = vmatpush.msra.mxu0 0.0
    %386 = vmatpush.msra.mxu0 0.0
    %387 = vmatpush.msra.mxu0 0.0
    %388 = vmatpush.msra.mxu0 0.0
    %389 = vmatpush.msra.mxu0 0.0
    %390 = vmatpush.msra.mxu0 0.0
    %391 = vmatpush.msra.mxu0 0.0
    %392 = vmatpush.msra.mxu0 0.0
    %393 = vmatpush.msra.mxu0 0.0
    %394 = vmatpush.msra.mxu0 0.0
    %395 = vmatpush.msra.mxu0 0.0
    %396 = vmatpush.msra.mxu0 %v377
    %397 = vmatmul.f32.gmra.mxu0 %v379
    %v398 = vpop.f32.mrf.mxu0
    %v399 = vadd.f32 0.0, %v398
    %400 = vdwg.mxu0
    %v402 = vsel %vm249, %v308, 0
    %404 = vmatpush.msra.mxu0 0.0
    %405 = vmatpush.msra.mxu0 0.0
    %406 = vmatpush.msra.mxu0 0.0
    %407 = vmatpush.msra.mxu0 0.0
    %408 = vmatpush.msra.mxu0 0.0
    %409 = vmatpush.msra.mxu0 0.0
    %410 = vmatpush.msra.mxu0 0.0
    %411 = vmatpush.msra.mxu0 0.0
    %412 = vmatpush.msra.mxu0 0.0
    %413 = vmatpush.msra.mxu0 0.0
    %414 = vmatpush.msra.mxu0 0.0
    %415 = vmatpush.msra.mxu0 0.0
    %416 = vmatpush.msra.mxu0 0.0
    %417 = vmatpush.msra.mxu0 0.0
    %418 = vmatpush.msra.mxu0 0.0
    %419 = vmatpush.msra.mxu0 %v310
    %420 = vmatmul.f32.gmra.mxu0 %v402
    %v421 = vpop.f32.mrf.mxu0
    %v422 = vadd.f32 %v399, %v421
    %423 = vdwg.mxu0
    %424 = vrot.lane.b32.xlu0 %v248, 112
    %v425 = vpop.permute.xlu0 %424
    %426 = vrot.lane.b32.xlu0 %v206, 112
    %v427 = vpop.permute.xlu0 %426
    %v428 = vsel %vm249, %v425, 0
    %v430 = vsel %vm249, %v427, 0
    %432 = vmatpush.xpose.msra.mxu0 0.0
    %433 = vmatpush.xpose.msra.mxu0 0.0
    %434 = vmatpush.xpose.msra.mxu0 0.0
    %435 = vmatpush.xpose.msra.mxu0 0.0
    %436 = vmatpush.xpose.msra.mxu0 0.0
    %437 = vmatpush.xpose.msra.mxu0 0.0
    %438 = vmatpush.xpose.msra.mxu0 0.0
    %439 = vmatpush.xpose.msra.mxu0 0.0
    %440 = vmatpush.xpose.msra.mxu0 0.0
    %441 = vmatpush.xpose.msra.mxu0 0.0
    %442 = vmatpush.xpose.msra.mxu0 0.0
    %443 = vmatpush.xpose.msra.mxu0 0.0
    %444 = vmatpush.xpose.msra.mxu0 0.0
    %445 = vmatpush.xpose.msra.mxu0 0.0
    %446 = vmatpush.xpose.msra.mxu0 0.0
    %447 = vmatpush.xpose.msra.mxu0 %v430
    %448 = vmatmul.f32.gmra.mxu0 %v428
    %v449 = vpop.f32.mrf.mxu0
    %v450 = vadd.f32 0.0, %v449
    %451 = vdwg.mxu0
    %v452 = vsel %vm249, %v450, -inf
    %453 = vmax.xlane.f32.xlu0 %v452
    %v454 = vpop.xlane.xlu0 %453
    %v455 = vsub.f32 %v450, %v454
    %v456 = vmul.f32 %v455, 1.442695
    %v457 = vpow.pop %v456
    %v458 = vsel %vm249, %v457, 0.0
    %459 = vadd.xlane.f32.xlu0 %v458
    %v460 = vpop.xlane.xlu0 %459
    %v461 = vrcp.pop %v460
    %v462 = vmul.f32 %v457, %v461
    %463 = vrot.lane.b32.xlu0 %v246, 112
    %v464 = vpop.permute.xlu0 %463
    %v467 = vsel %vm249, %v462, 0
    %469 = vmatpush.msra.mxu0 0.0
    %470 = vmatpush.msra.mxu0 0.0
    %471 = vmatpush.msra.mxu0 0.0
    %472 = vmatpush.msra.mxu0 0.0
    %473 = vmatpush.msra.mxu0 0.0
    %474 = vmatpush.msra.mxu0 0.0
    %475 = vmatpush.msra.mxu0 0.0
    %476 = vmatpush.msra.mxu0 0.0
    %477 = vmatpush.msra.mxu0 0.0
    %478 = vmatpush.msra.mxu0 0.0
    %479 = vmatpush.msra.mxu0 0.0
    %480 = vmatpush.msra.mxu0 0.0
    %481 = vmatpush.msra.mxu0 0.0
    %482 = vmatpush.msra.mxu0 0.0
    %483 = vmatpush.msra.mxu0 0.0
    %484 = vmatpush.msra.mxu0 %v464
    %485 = vmatmul.f32.gmra.mxu0 %v467
    %v486 = vpop.f32.mrf.mxu0
    %v487 = vadd.f32 0.0, %v486
    %488 = vdwg.mxu0
    %v489 = vld [vmem:[#allocation11 + $0x10] sm:$0xff]
    %v491 = vsel %vm249, %v487, 0
    %493 = vmatpush.msra.mxu0 0.0
    %494 = vmatpush.msra.mxu0 0.0
    %495 = vmatpush.msra.mxu0 0.0
    %496 = vmatpush.msra.mxu0 0.0
    %497 = vmatpush.msra.mxu0 0.0
    %498 = vmatpush.msra.mxu0 0.0
    %499 = vmatpush.msra.mxu0 0.0
    %500 = vmatpush.msra.mxu0 0.0
    %501 = vmatpush.msra.mxu0 0.0
    %502 = vmatpush.msra.mxu0 0.0
    %503 = vmatpush.msra.mxu0 0.0
    %504 = vmatpush.msra.mxu0 0.0
    %505 = vmatpush.msra.mxu0 0.0
    %506 = vmatpush.msra.mxu0 0.0
    %507 = vmatpush.msra.mxu0 0.0
    %508 = vmatpush.msra.mxu0 %v489
    %509 = vmatmul.f32.gmra.mxu0 %v491
    %v510 = vpop.f32.mrf.mxu0
    %v511 = vadd.f32 0.0, %v510
    %512 = vdwg.mxu0
    %v513 = vadd.f32 %v422, %v511
    %514 = vrot.lane.b32.xlu0 %v248, 104
    %v515 = vpop.permute.xlu0 %514
    %516 = vrot.lane.b32.xlu0 %v206, 104
    %v517 = vpop.permute.xlu0 %516
    %v518 = vsel %vm249, %v515, 0
    %v520 = vsel %vm249, %v517, 0
    %522 = vmatpush.xpose.msra.mxu0 0.0
    %523 = vmatpush.xpose.msra.mxu0 0.0
    %524 = vmatpush.xpose.msra.mxu0 0.0
    %525 = vmatpush.xpose.msra.mxu0 0.0
    %526 = vmatpush.xpose.msra.mxu0 0.0
    %527 = vmatpush.xpose.msra.mxu0 0.0
    %528 = vmatpush.xpose.msra.mxu0 0.0
    %529 = vmatpush.xpose.msra.mxu0 0.0
    %530 = vmatpush.xpose.msra.mxu0 0.0
    %531 = vmatpush.xpose.msra.mxu0 0.0
    %532 = vmatpush.xpose.msra.mxu0 0.0
    %533 = vmatpush.xpose.msra.mxu0 0.0
    %534 = vmatpush.xpose.msra.mxu0 0.0
    %535 = vmatpush.xpose.msra.mxu0 0.0
    %536 = vmatpush.xpose.msra.mxu0 0.0
    %537 = vmatpush.xpose.msra.mxu0 %v520
    %538 = vmatmul.f32.gmra.mxu0 %v518
    %v539 = vpop.f32.mrf.mxu0
    %v540 = vadd.f32 0.0, %v539
    %541 = vdwg.mxu0
    %v542 = vsel %vm249, %v540, -inf
    %543 = vmax.xlane.f32.xlu0 %v542
    %v544 = vpop.xlane.xlu0 %543
    %v545 = vsub.f32 %v540, %v544
    %v546 = vmul.f32 %v545, 1.442695
    %v547 = vpow.pop %v546
    %v548 = vsel %vm249, %v547, 0.0
    %549 = vadd.xlane.f32.xlu0 %v548
    %v550 = vpop.xlane.xlu0 %549
    %v551 = vrcp.pop %v550
    %v552 = vmul.f32 %v547, %v551
    %553 = vrot.lane.b32.xlu0 %v246, 104
    %v554 = vpop.permute.xlu0 %553
    %v557 = vsel %vm249, %v552, 0
    %559 = vmatpush.msra.mxu0 0.0
    %560 = vmatpush.msra.mxu0 0.0
    %561 = vmatpush.msra.mxu0 0.0
    %562 = vmatpush.msra.mxu0 0.0
    %563 = vmatpush.msra.mxu0 0.0
    %564 = vmatpush.msra.mxu0 0.0
    %565 = vmatpush.msra.mxu0 0.0
    %566 = vmatpush.msra.mxu0 0.0
    %567 = vmatpush.msra.mxu0 0.0
    %568 = vmatpush.msra.mxu0 0.0
    %569 = vmatpush.msra.mxu0 0.0
    %570 = vmatpush.msra.mxu0 0.0
    %571 = vmatpush.msra.mxu0 0.0
    %572 = vmatpush.msra.mxu0 0.0
    %573 = vmatpush.msra.mxu0 0.0
    %574 = vmatpush.msra.mxu0 %v554
    %575 = vmatmul.f32.gmra.mxu0 %v557
    %v576 = vpop.f32.mrf.mxu0
    %v577 = vadd.f32 0.0, %v576
    %578 = vdwg.mxu0
    %v579 = vld [vmem:[#allocation11 + $0x18] sm:$0xff]
    %v581 = vsel %vm249, %v577, 0
    %583 = vmatpush.msra.mxu0 0.0
    %584 = vmatpush.msra.mxu0 0.0
    %585 = vmatpush.msra.mxu0 0.0
    %586 = vmatpush.msra.mxu0 0.0
    %587 = vmatpush.msra.mxu0 0.0
    %588 = vmatpush.msra.mxu0 0.0
    %589 = vmatpush.msra.mxu0 0.0
    %590 = vmatpush.msra.mxu0 0.0
    %591 = vmatpush.msra.mxu0 0.0
    %592 = vmatpush.msra.mxu0 0.0
    %593 = vmatpush.msra.mxu0 0.0
    %594 = vmatpush.msra.mxu0 0.0
    %595 = vmatpush.msra.mxu0 0.0
    %596 = vmatpush.msra.mxu0 0.0
    %597 = vmatpush.msra.mxu0 0.0
    %598 = vmatpush.msra.mxu0 %v579
    %599 = vmatmul.f32.gmra.mxu0 %v581
    %v600 = vpop.f32.mrf.mxu0
    %v601 = vadd.f32 0.0, %v600
    %602 = vdwg.mxu0
    %v603 = vadd.f32 %v513, %v601
    %v604 = vld [vmem:[%s9] sm:$0x1]
    %v606 = vperm.slane %v604, 0
    %v608 = vadd.f32 %v603, %v606
    %609 = vst [vmem:[#allocation13] sm:$0xff] %v608
    // Predicated region
    $region66: #{tpu_custom_call.1} parent=1 // pred_check
      _
    $region67: #{tpu_custom_call.1} parent=1 // pred_check_branch
      %611 = sbr.rel (0) target = $region69
    $region68: #{tpu_custom_call.1} parent=1 // pred_region
      %613 = vsyncadd [#allocation4], 0
      %s615 = sshll.u32 [#allocation13], 4
      %s616 = int_to_ptr.vmem [resolvable:$true] %s615
      %s617 = sshll.u32 %s10, 4
      %s618 = int_to_ptr.hbm [resolvable:$true] %s617
      %620 = dma.vmem_to_hbm [thread:$0]  %s616, 128, %s618, [#allocation4]
    $region69: #{tpu_custom_call.1} parent=1 // pred_fallthru
      _
    // Predicated region
    $region70: #{tpu_custom_call.1} parent=1 // pred_check
      _
    $region71: #{tpu_custom_call.1} parent=1 // pred_check_branch
      %622 = sbr.rel (0) target = $region73
    $region72: #{tpu_custom_call.1} parent=1 // pred_region
      %624 = dma.done [#allocation4], 128
    $region73: #{tpu_custom_call.1} parent=1 // pred_fallthru
      _
    %625 = vsyncpa [#allocation3], 1
    %626 = vsyncpa [#allocation6], 1
    %627 = vsyncpa [#allocation9], 1
    %628 = vsyncpa [#allocation12], 1
    %629 = vsyncpa [#allocation4], 1

</llo_original>
